<compile_context>
chip_gen: v7x
topology: tpu7x:2x2x1
jax: 0.10.0
libtpu: 0.0.40
codegen_flags: <defaults>
</compile_context>

<pallas_src>
import jax
import jax.numpy as jnp
from jax.experimental import pallas as pl
from jax.experimental.pallas import tpu as pltpu

# ----- small, self-consistent model config -----
NGRAM_BINS = 64
EMBEDDING_DIM = 32
HIDDEN_SIZE = 32
CLASSES = 10

# Batch-tile cap. Per-row VMEM footprint is tiny (bf16 embs row = 512 B, bf16
# out row = 256 B, counts row = 256 B), so a 1024-row tile double-buffers in
# ~3.5 MiB -- comfortably inside the default scoped VMEM on v5e/v6e/v7x.
MAX_BLOCK_B = 1024


def fasttext_kernel(embs_ref, ids_ref, a_ref, tw_ref, b_ref, out_ref):
    """Fused forward: histogram ngram-gather + two lane-dense MXU matmuls."""
    TB, N = ids_ref.shape
    V = tw_ref.shape[0]

    # Ngram "gather" as a histogram: counts[b, v] = #occurrences of id v in row b.
    # Row 0 of the folded table is zero, so padding_idx=0 contributes nothing.
    # Per-n accumulation (N is tiny, unrolled at trace time) avoids any
    # (TB, N, V) 3-D intermediate and the cross-sublane reduce of the old version.
    ids = jnp.clip(ids_ref[...], 0, V - 1)          # match jnp.take's index clipping
    vocab = jax.lax.broadcasted_iota(jnp.int32, (TB, V), 1)
    counts = jnp.zeros((TB, V), jnp.float32)
    for n in range(N):
        counts = counts + (ids[:, n:n + 1] == vocab).astype(jnp.float32)

    # Two lane-dense matmuls, f32 accumulation:
    #   word path : embs2d (TB, W*D) bf16 @ A (W*D, 128) bf16  (mean + i2h∘h2o folded)
    #   ngram path: counts (TB, V)   bf16 @ Tw (V, 128)  bf16  (table + i2h∘h2o folded)
    logits = jnp.dot(embs_ref[...], a_ref[...], preferred_element_type=jnp.float32)
    logits = logits + jnp.dot(counts.astype(jnp.bfloat16), tw_ref[...],
                              preferred_element_type=jnp.float32)
    logits = logits + b_ref[...]
    out_ref[...] = logits.astype(out_ref.dtype)


def fuse_params(params, num_words, num_ngrams):
    """One-time param prep: fuse the two Linears, fold mean scale + embedding
    table into the weights, pad classes to a lane-dense 128, cast to bf16."""
    emb_table, w_i2h, b_i2h, w_h2o, b_h2o = params
    w12 = w_i2h.T @ w_h2o.T                     # (D, C)
    b12 = b_i2h @ w_h2o.T + b_h2o               # (C,)
    D, C = w12.shape
    cpad = max(128, -(-C // 128) * 128)         # lane-dense output width
    inv_total = 1.0 / float(num_words + num_ngrams)

    w12p = jnp.zeros((D, cpad), jnp.float32).at[:, :C].set(w12)
    b12p = jnp.zeros((1, cpad), jnp.float32).at[0, :C].set(b12)

    # Word path: (B, W, D) reshaped row-major to (B, W*D); A[w*D+d, c] = inv*w12[d, c].
    a = jnp.tile(inv_total * w12p, (num_words, 1)).astype(jnp.bfloat16)   # (W*D, 128)
    # Ngram path: embedding table folded through the fused linear.
    table_w = (inv_total * (emb_table @ w12p)).astype(jnp.bfloat16)       # (V, 128)
    return a, table_w, b12p


def _choose_block_b(batch):
    """Sublane-align the batch and pick a tile giving >=2 grid steps when possible
    (v7x has 2 TensorCores; 'parallel' sharding only splits grid steps)."""
    bp = -(-batch // 8) * 8
    if bp <= 8:
        return bp, bp
    grid = max(2, -(-bp // MAX_BLOCK_B))
    per = -(-bp // grid)
    tb = -(-per // 8) * 8
    return grid * tb, tb


def fasttext_forward(embs, ngram_ids, fused_params, *, num_classes=CLASSES):
    """embs: (B, W, D) float32 word embeddings; ngram_ids: (B, N) int32 indices."""
    a, table_w, b12p = fused_params
    B, W, D = embs.shape
    N = ngram_ids.shape[1]
    WD = W * D
    CPAD = a.shape[1]
    assert a.shape[0] == WD, "fused_params were built for a different num_words"

    Bp, block_b = _choose_block_b(B)
    # Flatten the word axis (contiguous reshape) and halve HBM traffic with bf16.
    embs2d = embs.reshape(B, WD).astype(jnp.bfloat16)
    if Bp != B:
        embs2d = jnp.pad(embs2d, ((0, Bp - B), (0, 0)))
        ngram_ids = jnp.pad(ngram_ids, ((0, Bp - B), (0, 0)))
    grid = (Bp // block_b,)

    out = pl.pallas_call(
        fasttext_kernel,
        out_shape=jax.ShapeDtypeStruct((Bp, CPAD), jnp.bfloat16),
        grid=grid,
        in_specs=[
            pl.BlockSpec((block_b, WD), lambda i: (i, 0)),     # word embeddings (bf16)
            pl.BlockSpec((block_b, N), lambda i: (i, 0)),      # ngram ids (int32)
            # Grid-invariant operands: index_map always (0, 0), so the pipeline
            # keeps them resident instead of re-DMA'ing per step.
            pl.BlockSpec((WD, CPAD), lambda i: (0, 0)),        # folded word weight
            pl.BlockSpec(table_w.shape, lambda i: (0, 0)),     # folded ngram table
            pl.BlockSpec((1, CPAD), lambda i: (0, 0)),         # fused bias (f32)
        ],
        out_specs=pl.BlockSpec((block_b, CPAD), lambda i: (i, 0)),
        compiler_params=pltpu.CompilerParams(
            dimension_semantics=("parallel",)),
    )(embs2d, ngram_ids, a, table_w, b12p)

    # TODO(synk): downstream consumers could take the padded (B, 128) bf16 block
    # directly and skip this slice/cast entirely.
    return out[:B, :num_classes].astype(jnp.float32)


def init_params(key):
    """Deterministic parameter init matching the PyTorch module's shapes."""
    k_emb, k_w1, k_b1, k_w2, k_b2 = jax.random.split(key, 5)

    # nn.Embedding(NGRAM_BINS, EMBEDDING_DIM, padding_idx=0): N(0,1), row 0 zeroed.
    emb_table = jax.random.normal(k_emb, (NGRAM_BINS, EMBEDDING_DIM), jnp.float32)
    emb_table = emb_table.at[0].set(0.0)

    # xavier_normal_ for the two Linear weights; PyTorch-default uniform biases.
    std1 = (2.0 / (EMBEDDING_DIM + HIDDEN_SIZE)) ** 0.5
    w_i2h = std1 * jax.random.normal(k_w1, (HIDDEN_SIZE, EMBEDDING_DIM), jnp.float32)
    bnd1 = 1.0 / (EMBEDDING_DIM ** 0.5)
    b_i2h = jax.random.uniform(k_b1, (HIDDEN_SIZE,), jnp.float32, -bnd1, bnd1)

    std2 = (2.0 / (HIDDEN_SIZE + CLASSES)) ** 0.5
    w_h2o = std2 * jax.random.normal(k_w2, (CLASSES, HIDDEN_SIZE), jnp.float32)
    bnd2 = 1.0 / (HIDDEN_SIZE ** 0.5)
    b_h2o = jax.random.uniform(k_b2, (CLASSES,), jnp.float32, -bnd2, bnd2)

    # TODO(synk): `temperature` parameter exists in the module but is unused in forward().
    return emb_table, w_i2h, b_i2h, w_h2o, b_h2o


def reference_forward(embs, ngram_ids, params):
    """Pure-JAX f32 reference mirroring the PyTorch forward exactly."""
    emb_table, w_i2h, b_i2h, w_h2o, b_h2o = params
    ngram_embs = jnp.take(emb_table, ngram_ids, axis=0)
    x = jnp.concatenate([embs, ngram_embs], axis=1)
    x = jnp.mean(x, axis=1)
    x = x @ w_i2h.T + b_i2h
    return x @ w_h2o.T + b_h2o


if __name__ == "__main__":
    key = jax.random.PRNGKey(0)
    k_params, k_embs, k_ids = jax.random.split(key, 3)

    B, W, N = 2, 8, 8  # batch, num word-embeddings, num ngrams per sentence
    params = init_params(k_params)
    fused_params = fuse_params(params, num_words=W, num_ngrams=N)

    embs = jax.random.normal(k_embs, (B, W, EMBEDDING_DIM), jnp.float32)
    ngram_ids = jax.random.randint(k_ids, (B, N), 0, NGRAM_BINS, dtype=jnp.int32)

    logits = fasttext_forward(embs, ngram_ids, fused_params)
    logits = jax.block_until_ready(logits)

    ref = reference_forward(embs, ngram_ids, params)
    assert logits.shape == (B, CLASSES)
    # bf16 inputs/weights/output with f32 accumulation -> relaxed tolerance.
    assert jnp.allclose(logits, ref, atol=2e-2, rtol=2e-2), \
        float(jnp.max(jnp.abs(logits - ref)))

    print("KERNEL_OK")
</pallas_src>

<mosaic_0001>
module attributes {stable_mosaic.version = 11 : i64} {
  func.func @fasttext_kernel(%arg0: i32, %arg1: memref<8x256xbf16, #tpu.memory_space<vmem>>, %arg2: memref<8x8xi32, #tpu.memory_space<vmem>>, %arg3: memref<256x128xbf16, #tpu.memory_space<vmem>>, %arg4: memref<64x128xbf16, #tpu.memory_space<vmem>>, %arg5: memref<1x128xf32, #tpu.memory_space<vmem>>, %arg6: memref<8x128xbf16, #tpu.memory_space<vmem>>) attributes {dimension_semantics = [#tpu.dimension_semantics<parallel>], iteration_bounds = array<i64: 1>, scalar_prefetch = 0 : i64, scratch_operands = 0 : i64, tpu.core_type = #tpu.core_type<tc>, window_params = [{transform_indices = @transform_0, window_bounds = array<i64: 8, 256>}, {transform_indices = @transform_1, window_bounds = array<i64: 8, 8>}, {pipeline_mode = #tpu.pipeline_mode<synchronous>, transform_indices = @transform_2, window_bounds = array<i64: 256, 128>}, {pipeline_mode = #tpu.pipeline_mode<synchronous>, transform_indices = @transform_3, window_bounds = array<i64: 64, 128>}, {pipeline_mode = #tpu.pipeline_mode<synchronous>, transform_indices = @transform_4, window_bounds = array<i64: 1, 128>}, {transform_indices = @transform_5, window_bounds = array<i64: 8, 128>}]} {
    %c0 = arith.constant 0 : index
    %c0_0 = arith.constant 0 : index
    %0 = vector.load %arg2[%c0, %c0_0] : memref<8x8xi32, #tpu.memory_space<vmem>>, vector<8x8xi32>
    %c0_i32 = arith.constant 0 : i32
    %c63_i32 = arith.constant 63 : i32
    %1 = vector.broadcast %c0_i32 : i32 to vector<8x8xi32>
    %2 = arith.maxsi %1, %0 : vector<8x8xi32>
    %3 = vector.broadcast %c63_i32 : i32 to vector<8x8xi32>
    %4 = arith.minsi %3, %2 : vector<8x8xi32>
    %5 = tpu.iota {dimensions = array<i32: 1>} : vector<8x64xi32>
    %cst = arith.constant 0.000000e+00 : f32
    %6 = vector.broadcast %cst : f32 to vector<8x64xf32>
    %7 = vector.extract_strided_slice %4 {offsets = [0, 0], sizes = [8, 1], strides = [1, 1]} : vector<8x8xi32> to vector<8x1xi32>
    %8 = vector.broadcast %7 : vector<8x1xi32> to vector<8x64xi32>
    %9 = arith.cmpi eq, %8, %5 : vector<8x64xi32>
    %10 = arith.extui %9 : vector<8x64xi1> to vector<8x64xi32>
    %11 = arith.sitofp %10 : vector<8x64xi32> to vector<8x64xf32>
    %12 = arith.addf %6, %11 : vector<8x64xf32>
    %13 = vector.extract_strided_slice %4 {offsets = [0, 1], sizes = [8, 1], strides = [1, 1]} : vector<8x8xi32> to vector<8x1xi32>
    %14 = vector.broadcast %13 : vector<8x1xi32> to vector<8x64xi32>
    %15 = arith.cmpi eq, %14, %5 : vector<8x64xi32>
    %16 = arith.extui %15 : vector<8x64xi1> to vector<8x64xi32>
    %17 = arith.sitofp %16 : vector<8x64xi32> to vector<8x64xf32>
    %18 = arith.addf %12, %17 : vector<8x64xf32>
    %19 = vector.extract_strided_slice %4 {offsets = [0, 2], sizes = [8, 1], strides = [1, 1]} : vector<8x8xi32> to vector<8x1xi32>
    %20 = vector.broadcast %19 : vector<8x1xi32> to vector<8x64xi32>
    %21 = arith.cmpi eq, %20, %5 : vector<8x64xi32>
    %22 = arith.extui %21 : vector<8x64xi1> to vector<8x64xi32>
    %23 = arith.sitofp %22 : vector<8x64xi32> to vector<8x64xf32>
    %24 = arith.addf %18, %23 : vector<8x64xf32>
    %25 = vector.extract_strided_slice %4 {offsets = [0, 3], sizes = [8, 1], strides = [1, 1]} : vector<8x8xi32> to vector<8x1xi32>
    %26 = vector.broadcast %25 : vector<8x1xi32> to vector<8x64xi32>
    %27 = arith.cmpi eq, %26, %5 : vector<8x64xi32>
    %28 = arith.extui %27 : vector<8x64xi1> to vector<8x64xi32>
    %29 = arith.sitofp %28 : vector<8x64xi32> to vector<8x64xf32>
    %30 = arith.addf %24, %29 : vector<8x64xf32>
    %31 = vector.extract_strided_slice %4 {offsets = [0, 4], sizes = [8, 1], strides = [1, 1]} : vector<8x8xi32> to vector<8x1xi32>
    %32 = vector.broadcast %31 : vector<8x1xi32> to vector<8x64xi32>
    %33 = arith.cmpi eq, %32, %5 : vector<8x64xi32>
    %34 = arith.extui %33 : vector<8x64xi1> to vector<8x64xi32>
    %35 = arith.sitofp %34 : vector<8x64xi32> to vector<8x64xf32>
    %36 = arith.addf %30, %35 : vector<8x64xf32>
    %37 = vector.extract_strided_slice %4 {offsets = [0, 5], sizes = [8, 1], strides = [1, 1]} : vector<8x8xi32> to vector<8x1xi32>
    %38 = vector.broadcast %37 : vector<8x1xi32> to vector<8x64xi32>
    %39 = arith.cmpi eq, %38, %5 : vector<8x64xi32>
    %40 = arith.extui %39 : vector<8x64xi1> to vector<8x64xi32>
    %41 = arith.sitofp %40 : vector<8x64xi32> to vector<8x64xf32>
    %42 = arith.addf %36, %41 : vector<8x64xf32>
    %43 = vector.extract_strided_slice %4 {offsets = [0, 6], sizes = [8, 1], strides = [1, 1]} : vector<8x8xi32> to vector<8x1xi32>
    %44 = vector.broadcast %43 : vector<8x1xi32> to vector<8x64xi32>
    %45 = arith.cmpi eq, %44, %5 : vector<8x64xi32>
    %46 = arith.extui %45 : vector<8x64xi1> to vector<8x64xi32>
    %47 = arith.sitofp %46 : vector<8x64xi32> to vector<8x64xf32>
    %48 = arith.addf %42, %47 : vector<8x64xf32>
    %49 = vector.extract_strided_slice %4 {offsets = [0, 7], sizes = [8, 1], strides = [1, 1]} : vector<8x8xi32> to vector<8x1xi32>
    %50 = vector.broadcast %49 : vector<8x1xi32> to vector<8x64xi32>
    %51 = arith.cmpi eq, %50, %5 : vector<8x64xi32>
    %52 = arith.extui %51 : vector<8x64xi1> to vector<8x64xi32>
    %53 = arith.sitofp %52 : vector<8x64xi32> to vector<8x64xf32>
    %54 = arith.addf %48, %53 : vector<8x64xf32>
    %c0_1 = arith.constant 0 : index
    %c0_2 = arith.constant 0 : index
    %55 = vector.load %arg1[%c0_1, %c0_2] : memref<8x256xbf16, #tpu.memory_space<vmem>>, vector<8x256xbf16>
    %c0_3 = arith.constant 0 : index
    %c0_4 = arith.constant 0 : index
    %56 = vector.load %arg3[%c0_3, %c0_4] : memref<256x128xbf16, #tpu.memory_space<vmem>>, vector<256x128xbf16>
    %cst_5 = arith.constant dense<0.000000e+00> : vector<8x128xf32>
    %57 = tpu.matmul %55, %56, %cst_5 {dimension_numbers = #tpu.dot_dimension_numbers<[1], [0], [0], [1], [0, 0, 1, 1], [], []>} : vector<8x256xbf16>, vector<256x128xbf16>, vector<8x128xf32> -> vector<8x128xf32>
    %58 = arith.truncf %54 : vector<8x64xf32> to vector<8x64xbf16>
    %c0_6 = arith.constant 0 : index
    %c0_7 = arith.constant 0 : index
    %59 = vector.load %arg4[%c0_6, %c0_7] : memref<64x128xbf16, #tpu.memory_space<vmem>>, vector<64x128xbf16>
    %cst_8 = arith.constant dense<0.000000e+00> : vector<8x128xf32>
    %60 = tpu.matmul %58, %59, %cst_8 {dimension_numbers = #tpu.dot_dimension_numbers<[1], [0], [0], [1], [0, 0, 1, 1], [], []>} : vector<8x64xbf16>, vector<64x128xbf16>, vector<8x128xf32> -> vector<8x128xf32>
    %61 = arith.addf %57, %60 : vector<8x128xf32>
    %c0_9 = arith.constant 0 : index
    %c0_10 = arith.constant 0 : index
    %62 = vector.load %arg5[%c0_9, %c0_10] : memref<1x128xf32, #tpu.memory_space<vmem>>, vector<1x128xf32>
    %63 = vector.broadcast %62 : vector<1x128xf32> to vector<8x128xf32>
    %64 = arith.addf %61, %63 : vector<8x128xf32>
    %65 = arith.truncf %64 : vector<8x128xf32> to vector<8x128xbf16>
    %c0_11 = arith.constant 0 : index
    %c0_12 = arith.constant 0 : index
    %66 = vector.load %arg6[%c0_11, %c0_12] : memref<8x128xbf16, #tpu.memory_space<vmem>>, vector<8x128xbf16>
    tpu.vector_store %arg6[%c0_11, %c0_12], %65 {strides = array<i32>} : memref<8x128xbf16, #tpu.memory_space<vmem>>, vector<8x128xbf16>,
    return
  }
  func.func @transform_0(%arg0: i32) -> (i32, i32) {
    %c0_i32 = arith.constant 0 : i32
    %c0_i32_0 = arith.constant 0 : i32
    return %arg0, %c0_i32 : i32, i32
  }
  func.func @transform_1(%arg0: i32) -> (i32, i32) {
    %c0_i32 = arith.constant 0 : i32
    %c0_i32_0 = arith.constant 0 : i32
    return %arg0, %c0_i32 : i32, i32
  }
  func.func @transform_2(%arg0: i32) -> (i32, i32) {
    %c0_i32 = arith.constant 0 : i32
    %c0_i32_0 = arith.constant 0 : i32
    %c0_i32_1 = arith.constant 0 : i32
    return %c0_i32, %c0_i32_0 : i32, i32
  }
  func.func @transform_3(%arg0: i32) -> (i32, i32) {
    %c0_i32 = arith.constant 0 : i32
    %c0_i32_0 = arith.constant 0 : i32
    %c0_i32_1 = arith.constant 0 : i32
    return %c0_i32, %c0_i32_0 : i32, i32
  }
  func.func @transform_4(%arg0: i32) -> (i32, i32) {
    %c0_i32 = arith.constant 0 : i32
    %c0_i32_0 = arith.constant 0 : i32
    %c0_i32_1 = arith.constant 0 : i32
    return %c0_i32, %c0_i32_0 : i32, i32
  }
  func.func @transform_5(%arg0: i32) -> (i32, i32) {
    %c0_i32 = arith.constant 0 : i32
    %c0_i32_0 = arith.constant 0 : i32
    return %arg0, %c0_i32 : i32, i32
  }
}

</mosaic_0001>

<llo_original>
// kernel: tpu_custom_call.1
$region0: #{tpu_custom_call.1}
  #allocation0 [shape = 'u32[]', space=smem, size = 0x4, offset = 0x4, fixed_abs, tag = 'smem constant byte address 0x4 - core index']
  #allocation1 [shape = 'u32[144,128]{1,0:T(1,128)}', space=vmem, size = 0x12000, scoped, tag = 'internal scratch']
  %s0 = inlined_call_operand.hbm [shape: bf16[8,256], index: 0, kind: input, shape index: {}]
  %s1 = inlined_call_operand.hbm [shape: s32[8,8], index: 1, kind: input, shape index: {}]
  %s2 = inlined_call_operand.hbm [shape: bf16[256,128], index: 2, kind: input, shape index: {}]
  %s3 = inlined_call_operand.hbm [shape: bf16[64,128], index: 3, kind: input, shape index: {}]
  %s4 = inlined_call_operand.vmem [shape: f32[1,128], index: 4, kind: input, shape index: {}]
  %s5 = inlined_call_operand.hbm [shape: bf16[8,128], index: 5, kind: output, shape index: {}]
  %s6 = sld [smem:[#allocation0]]
  $region46: #{tpu_custom_call.1} parent=0
    _
  %s8 = ssub.s32 1, %s6
  %s9 = scalar_select 0, %s8, %s6
  $region1: #{tpu_custom_call.1} parent=0
    #allocation2 [shape = 'u8[4096]{0}', space=vmem, size = 0x1000, scoped, tag = 'input window, operand 0, single buffered']
    #allocation3 [shape = 's32[1]{0}', space=sflag, size = 0x4, scoped, tag = 'scoped memory for tpu_custom_call.1']
    #allocation4 [shape = 's32[1]{0}', space=sflag, size = 0x4, scoped, tag = 'scoped memory for tpu_custom_call.1']
    #allocation5 [shape = 'u8[4096]{0}', space=vmem, size = 0x1000, scoped, tag = 'input window, operand 1, single buffered']
    #allocation6 [shape = 's32[1]{0}', space=sflag, size = 0x4, scoped, tag = 'scoped memory for tpu_custom_call.1']
    #allocation7 [shape = 'u8[65536]{0}', space=vmem, size = 0x10000, scoped, tag = 'input window, operand 2, single buffered']
    #allocation8 [shape = 'u8[16384]{0}', space=vmem, size = 0x4000, scoped, tag = 'input window, operand 3, single buffered']
    #allocation9 [shape = 's32[1]{0}', space=sflag, size = 0x4, scoped, tag = 'scoped memory for tpu_custom_call.1']
    #allocation10 [shape = 'u8[2048]{0}', space=vmem, size = 0x800, scoped, tag = 'output window, operand 0, single buffered']
    %10 = vsyncpa [#allocation3], 0
    %11 = vsyncpa [#allocation6], 0
    %12 = vsyncpa [#allocation9], 0
    %13 = vsyncpa [#allocation4], 0
    // Predicated region
    $region2: #{tpu_custom_call.1} parent=1 // pred_check
      _
    $region3: #{tpu_custom_call.1} parent=1 // pred_check_branch
      %15 = sbr.rel (0) target = $region5
    $region4: #{tpu_custom_call.1} parent=1 // pred_region
      %s17 = ssub.s32 128, 128
      %18 = vsyncadd [#allocation3], %s17
      %s20 = sshll.u32 [#allocation2], 4
      %s21 = int_to_ptr.vmem [resolvable:$true] %s20
      %23 = dma.hbm_to_vmem [thread:$0]  %s0, 128, %s21, [#allocation3]
    $region5: #{tpu_custom_call.1} parent=1 // pred_fallthru
      _
    // Predicated region
    $region6: #{tpu_custom_call.1} parent=1 // pred_check
      _
    $region7: #{tpu_custom_call.1} parent=1 // pred_check_branch
      %25 = sbr.rel (0) target = $region9
    $region8: #{tpu_custom_call.1} parent=1 // pred_region
      %s27 = ssub.s32 128, 128
      %28 = vsyncadd [#allocation6], %s27
      %s30 = sshll.u32 [#allocation5], 4
      %s31 = int_to_ptr.vmem [resolvable:$true] %s30
      %33 = dma.hbm_to_vmem [thread:$0]  %s1, 128, %s31, [#allocation6]
    $region9: #{tpu_custom_call.1} parent=1 // pred_fallthru
      _
    // Predicated region
    $region10: #{tpu_custom_call.1} parent=1 // pred_check
      _
    $region11: #{tpu_custom_call.1} parent=1 // pred_check_branch
      %35 = sbr.rel (0) target = $region13
    $region12: #{tpu_custom_call.1} parent=1 // pred_region
      %s37 = ssub.s32 2048, 2048
      %38 = vsyncadd [#allocation6], %s37
      %s39 = sshll.u32 [#allocation7], 4
      %s40 = int_to_ptr.vmem [resolvable:$true] %s39
      %45 = dma.hbm_to_vmem [thread:$0]  %s2, 2048, %s40, [#allocation6], 64, 64, 4
    $region13: #{tpu_custom_call.1} parent=1 // pred_fallthru
      _
    // Predicated region
    $region14: #{tpu_custom_call.1} parent=1 // pred_check
      _
    $region15: #{tpu_custom_call.1} parent=1 // pred_check_branch
      %47 = sbr.rel (0) target = $region17
    $region16: #{tpu_custom_call.1} parent=1 // pred_region
      %s49 = ssub.s32 512, 512
      %50 = vsyncadd [#allocation9], %s49
      %s51 = sshll.u32 [#allocation8], 4
      %s52 = int_to_ptr.vmem [resolvable:$true] %s51
      %57 = dma.hbm_to_vmem [thread:$0]  %s3, 512, %s52, [#allocation9], 64, 64, 4
    $region17: #{tpu_custom_call.1} parent=1 // pred_fallthru
      _
    // Predicated region
    $region18: #{tpu_custom_call.1} parent=1 // pred_check
      _
    $region19: #{tpu_custom_call.1} parent=1 // pred_check_branch
      %59 = sbr.rel (0) target = $region21
    $region20: #{tpu_custom_call.1} parent=1 // pred_region
      _
    $region21: #{tpu_custom_call.1} parent=1 // pred_fallthru
      _
    // Predicated region
    $region22: #{tpu_custom_call.1} parent=1 // pred_check
      _
    $region23: #{tpu_custom_call.1} parent=1 // pred_check_branch
      %61 = sbr.rel (0) target = $region25
    $region24: #{tpu_custom_call.1} parent=1 // pred_region
      %62 = dma.done [#allocation3], 128
    $region25: #{tpu_custom_call.1} parent=1 // pred_fallthru
      _
    // Predicated region
    $region26: #{tpu_custom_call.1} parent=1 // pred_check
      _
    $region27: #{tpu_custom_call.1} parent=1 // pred_check_branch
      %64 = sbr.rel (0) target = $region29
    $region28: #{tpu_custom_call.1} parent=1 // pred_region
      %65 = dma.done [#allocation6], 128
    $region29: #{tpu_custom_call.1} parent=1 // pred_fallthru
      _
    // Predicated region
    $region30: #{tpu_custom_call.1} parent=1 // pred_check
      _
    $region31: #{tpu_custom_call.1} parent=1 // pred_check_branch
      %67 = sbr.rel (0) target = $region33
    $region32: #{tpu_custom_call.1} parent=1 // pred_region
      %68 = dma.done [#allocation6], 2048
    $region33: #{tpu_custom_call.1} parent=1 // pred_fallthru
      _
    // Predicated region
    $region34: #{tpu_custom_call.1} parent=1 // pred_check
      _
    $region35: #{tpu_custom_call.1} parent=1 // pred_check_branch
      %70 = sbr.rel (0) target = $region37
    $region36: #{tpu_custom_call.1} parent=1 // pred_region
      %71 = dma.done [#allocation9], 512
    $region37: #{tpu_custom_call.1} parent=1 // pred_fallthru
      _
    %v73 = vld [vmem:[#allocation5] sm:$0xff]
    %vm74 = vcmp.gt.s32.totalorder %v73, 0
    %v75 = vsel %vm74, %v73, 0
    %vm76 = vcmp.lt.s32.totalorder %v75, 63
    %v77 = vsel %vm76, %v75, 63
    %v78 = vlaneseq
    %v79 = vand.u32 %v78, 127
    %80 = vset.pattern.permute.xlu0 0
    %81 = vperm.xlu0 %80, %v77
    %v82 = vpop.permute.xlu0 %81
    %vm83 = vcmp.eq.s32.totalorder %v82, %v79
    %v84 = vsel %vm83, 1, 0
    %v85 = vcvt.s32.f32 %v84
    %v86 = vadd.f32 %v85, 0.0
    %87 = vset.pattern.permute.xlu0 1
    %88 = vperm.xlu0 %87, %v77
    %v89 = vpop.permute.xlu0 %88
    %vm90 = vcmp.eq.s32.totalorder %v89, %v79
    %v91 = vsel %vm90, 1, 0
    %v92 = vcvt.s32.f32 %v91
    %v93 = vadd.f32 %v86, %v92
    %94 = vset.pattern.permute.xlu0 2
    %95 = vperm.xlu0 %94, %v77
    %v96 = vpop.permute.xlu0 %95
    %vm97 = vcmp.eq.s32.totalorder %v96, %v79
    %v98 = vsel %vm97, 1, 0
    %v99 = vcvt.s32.f32 %v98
    %v100 = vadd.f32 %v93, %v99
    %101 = vset.pattern.permute.xlu0 3
    %102 = vperm.xlu0 %101, %v77
    %v103 = vpop.permute.xlu0 %102
    %vm104 = vcmp.eq.s32.totalorder %v103, %v79
    %v105 = vsel %vm104, 1, 0
    %v106 = vcvt.s32.f32 %v105
    %v107 = vadd.f32 %v100, %v106
    %108 = vset.pattern.permute.xlu0 4
    %109 = vperm.xlu0 %108, %v77
    %v110 = vpop.permute.xlu0 %109
    %vm111 = vcmp.eq.s32.totalorder %v110, %v79
    %v112 = vsel %vm111, 1, 0
    %v113 = vcvt.s32.f32 %v112
    %v114 = vadd.f32 %v107, %v113
    %115 = vset.pattern.permute.xlu0 5
    %116 = vperm.xlu0 %115, %v77
    %v117 = vpop.permute.xlu0 %116
    %vm118 = vcmp.eq.s32.totalorder %v117, %v79
    %v119 = vsel %vm118, 1, 0
    %v120 = vcvt.s32.f32 %v119
    %v121 = vadd.f32 %v114, %v120
    %122 = vset.pattern.permute.xlu0 6
    %123 = vperm.xlu0 %122, %v77
    %v124 = vpop.permute.xlu0 %123
    %vm125 = vcmp.eq.s32.totalorder %v124, %v79
    %v126 = vsel %vm125, 1, 0
    %v127 = vcvt.s32.f32 %v126
    %v128 = vadd.f32 %v121, %v127
    %129 = vset.pattern.permute.xlu0 7
    %130 = vperm.xlu0 %129, %v77
    %v131 = vpop.permute.xlu0 %130
    %vm132 = vcmp.eq.s32.totalorder %v131, %v79
    %v133 = vsel %vm132, 1, 0
    %v134 = vcvt.s32.f32 %v133
    %v135 = vadd.f32 %v128, %v134
    %v136 = vld [vmem:[#allocation2] sm:$0xff]
    %v137 = vld [vmem:[#allocation7] sm:$0xf]
    %v138 = vld [vmem:[#allocation7 + $0x4] sm:$0xf]
    %v139 = vld [vmem:[#allocation7 + $0x8] sm:$0xf]
    %v140 = vld [vmem:[#allocation7 + $0xc] sm:$0xf]
    %v141 = vld [vmem:[#allocation7 + $0x10] sm:$0xf]
    %v142 = vld [vmem:[#allocation7 + $0x14] sm:$0xf]
    %v143 = vld [vmem:[#allocation7 + $0x18] sm:$0xf]
    %v144 = vld [vmem:[#allocation7 + $0x1c] sm:$0xf]
    %v145 = vld [vmem:[#allocation7 + $0x20] sm:$0xf]
    %v146 = vld [vmem:[#allocation7 + $0x24] sm:$0xf]
    %v147 = vld [vmem:[#allocation7 + $0x28] sm:$0xf]
    %v148 = vld [vmem:[#allocation7 + $0x2c] sm:$0xf]
    %v149 = vld [vmem:[#allocation7 + $0x30] sm:$0xf]
    %v150 = vld [vmem:[#allocation7 + $0x34] sm:$0xf]
    %v151 = vld [vmem:[#allocation7 + $0x38] sm:$0xf]
    %v152 = vld [vmem:[#allocation7 + $0x3c] sm:$0xf]
    %v153 = vld [vmem:[#allocation7 + $0x40] sm:$0xf]
    %v154 = vld [vmem:[#allocation7 + $0x44] sm:$0xf]
    %v155 = vld [vmem:[#allocation7 + $0x48] sm:$0xf]
    %v156 = vld [vmem:[#allocation7 + $0x4c] sm:$0xf]
    %v157 = vld [vmem:[#allocation7 + $0x50] sm:$0xf]
    %v158 = vld [vmem:[#allocation7 + $0x54] sm:$0xf]
    %v159 = vld [vmem:[#allocation7 + $0x58] sm:$0xf]
    %v160 = vld [vmem:[#allocation7 + $0x5c] sm:$0xf]
    %v161 = vld [vmem:[#allocation7 + $0x60] sm:$0xf]
    %v162 = vld [vmem:[#allocation7 + $0x64] sm:$0xf]
    %v163 = vld [vmem:[#allocation7 + $0x68] sm:$0xf]
    %v164 = vld [vmem:[#allocation7 + $0x6c] sm:$0xf]
    %v165 = vld [vmem:[#allocation7 + $0x70] sm:$0xf]
    %v166 = vld [vmem:[#allocation7 + $0x74] sm:$0xf]
    %v167 = vld [vmem:[#allocation7 + $0x78] sm:$0xf]
    %v168 = vld [vmem:[#allocation7 + $0x7c] sm:$0xf]
    %v169 = vpack.c.bf16 %v135, %v135
    %v170 = vld [vmem:[#allocation8] sm:$0xf]
    %v171 = vld [vmem:[#allocation8 + $0x4] sm:$0xf]
    %v172 = vld [vmem:[#allocation8 + $0x8] sm:$0xf]
    %v173 = vld [vmem:[#allocation8 + $0xc] sm:$0xf]
    %v174 = vld [vmem:[#allocation8 + $0x10] sm:$0xf]
    %v175 = vld [vmem:[#allocation8 + $0x14] sm:$0xf]
    %v176 = vld [vmem:[#allocation8 + $0x18] sm:$0xf]
    %v177 = vld [vmem:[#allocation8 + $0x1c] sm:$0xf]
    %v186 = vunpack.c.l.b16 %v170
    %v187 = vunpack.c.l.b16 %v171
    %v188 = vunpack.c.l.b16 %v172
    %v189 = vunpack.c.l.b16 %v173
    %v190 = vunpack.c.l.b16 %v174
    %v191 = vunpack.c.l.b16 %v175
    %v192 = vunpack.c.l.b16 %v176
    %v193 = vunpack.c.l.b16 %v177
    %v194 = vpack.c.b16 %v187, %v186
    %v195 = vpack.c.b16 %v189, %v188
    %v196 = vpack.c.b16 %v191, %v190
    %v197 = vpack.c.b16 %v193, %v192
    %vm202 = vcmask 523264
    %v204 = vsel %vm202, %v169, 0
    %206 = vmatprep.subr.bf16.mxu0 0
    %207 = vmatpush1.bf16.msra.mxu0 %v194
    %208 = vmatprep.subr.bf16.mxu0 0
    %209 = vmatpush1.bf16.msra.mxu0 %v195
    %210 = vmatprep.subr.bf16.mxu0 0
    %211 = vmatpush1.bf16.msra.mxu0 %v196
    %212 = vmatprep.subr.bf16.mxu0 0
    %213 = vmatpush1.bf16.msra.mxu0 %v197
    %214 = vmatprep.subr.bf16.mxu0 0
    %215 = vmatpush1.bf16.msra.mxu0 0
    %216 = vmatprep.subr.bf16.mxu0 0
    %217 = vmatpush1.bf16.msra.mxu0 0
    %218 = vmatprep.subr.bf16.mxu0 0
    %219 = vmatpush1.bf16.msra.mxu0 0
    %220 = vmatprep.subr.bf16.mxu0 0
    %221 = vmatpush1.bf16.msra.mxu0 0
    %222 = vmatprep.subr.bf16.mxu0 0
    %223 = vmatpush1.bf16.msra.mxu0 0
    %224 = vmatprep.subr.bf16.mxu0 0
    %225 = vmatpush1.bf16.msra.mxu0 0
    %226 = vmatprep.subr.bf16.mxu0 0
    %227 = vmatpush1.bf16.msra.mxu0 0
    %228 = vmatprep.subr.bf16.mxu0 0
    %229 = vmatpush1.bf16.msra.mxu0 0
    %230 = vmatprep.subr.bf16.mxu0 0
    %231 = vmatpush1.bf16.msra.mxu0 0
    %232 = vmatprep.subr.bf16.mxu0 0
    %233 = vmatpush1.bf16.msra.mxu0 0
    %234 = vmatprep.subr.bf16.mxu0 0
    %235 = vmatpush1.bf16.msra.mxu0 0
    %236 = vmatprep.subr.bf16.mxu0 0
    %237 = vmatpush1.bf16.msra.mxu0 0
    %238 = vmatprep.mubr.bf16.mxu0 0
    %239 = vmatmul.mubr.bf16.gmra.mrb[0].mxu0 %v204
    %v240 = vpop.f32.mrb[0].mxu0
    %v241 = vadd.f32 0.0, %v240
    %v242 = vpop.f32.mrb[0].mxu0
    %v243 = vpop.f32.mrb[0].mxu0
    %v244 = vpop.f32.mrb[0].mxu0
    %245 = vdwg.mxu0
    %v247 = vunpack.c.l.b16 %v136
    %v248 = vunpack.c.h.b16 %v136
    %v249 = vpack.c.b16 %v247, %v247
    %v250 = vpack.c.b16 %v248, %v248
    %v285 = vunpack.c.l.b16 %v137
    %v286 = vunpack.c.l.b16 %v138
    %v287 = vunpack.c.l.b16 %v139
    %v288 = vunpack.c.l.b16 %v140
    %v289 = vunpack.c.l.b16 %v141
    %v290 = vunpack.c.l.b16 %v142
    %v291 = vunpack.c.l.b16 %v143
    %v292 = vunpack.c.l.b16 %v144
    %v293 = vunpack.c.l.b16 %v145
    %v294 = vunpack.c.l.b16 %v146
    %v295 = vunpack.c.l.b16 %v147
    %v296 = vunpack.c.l.b16 %v148
    %v297 = vunpack.c.l.b16 %v149
    %v298 = vunpack.c.l.b16 %v150
    %v299 = vunpack.c.l.b16 %v151
    %v300 = vunpack.c.l.b16 %v152
    %v301 = vunpack.c.l.b16 %v153
    %v302 = vunpack.c.l.b16 %v154
    %v303 = vunpack.c.l.b16 %v155
    %v304 = vunpack.c.l.b16 %v156
    %v305 = vunpack.c.l.b16 %v157
    %v306 = vunpack.c.l.b16 %v158
    %v307 = vunpack.c.l.b16 %v159
    %v308 = vunpack.c.l.b16 %v160
    %v309 = vunpack.c.l.b16 %v161
    %v310 = vunpack.c.l.b16 %v162
    %v311 = vunpack.c.l.b16 %v163
    %v312 = vunpack.c.l.b16 %v164
    %v313 = vunpack.c.l.b16 %v165
    %v314 = vunpack.c.l.b16 %v166
    %v315 = vunpack.c.l.b16 %v167
    %v316 = vunpack.c.l.b16 %v168
    %v317 = vpack.c.b16 %v286, %v285
    %v318 = vpack.c.b16 %v288, %v287
    %v319 = vpack.c.b16 %v290, %v289
    %v320 = vpack.c.b16 %v292, %v291
    %v321 = vpack.c.b16 %v294, %v293
    %v322 = vpack.c.b16 %v296, %v295
    %v323 = vpack.c.b16 %v298, %v297
    %v324 = vpack.c.b16 %v300, %v299
    %v325 = vpack.c.b16 %v302, %v301
    %v326 = vpack.c.b16 %v304, %v303
    %v327 = vpack.c.b16 %v306, %v305
    %v328 = vpack.c.b16 %v308, %v307
    %v329 = vpack.c.b16 %v310, %v309
    %v330 = vpack.c.b16 %v312, %v311
    %v331 = vpack.c.b16 %v314, %v313
    %v332 = vpack.c.b16 %v316, %v315
    %349 = vmatprep.subr.bf16.mxu0 0
    %350 = vmatpush1.bf16.msra.mxu0 %v317
    %351 = vmatprep.subr.bf16.mxu0 0
    %352 = vmatpush1.bf16.msra.mxu0 %v318
    %353 = vmatprep.subr.bf16.mxu0 0
    %354 = vmatpush1.bf16.msra.mxu0 %v319
    %355 = vmatprep.subr.bf16.mxu0 0
    %356 = vmatpush1.bf16.msra.mxu0 %v320
    %357 = vmatprep.subr.bf16.mxu0 0
    %358 = vmatpush1.bf16.msra.mxu0 %v321
    %359 = vmatprep.subr.bf16.mxu0 0
    %360 = vmatpush1.bf16.msra.mxu0 %v322
    %361 = vmatprep.subr.bf16.mxu0 0
    %362 = vmatpush1.bf16.msra.mxu0 %v323
    %363 = vmatprep.subr.bf16.mxu0 0
    %364 = vmatpush1.bf16.msra.mxu0 %v324
    %365 = vmatprep.subr.bf16.mxu0 0
    %366 = vmatpush1.bf16.msra.mxu0 %v325
    %367 = vmatprep.subr.bf16.mxu0 0
    %368 = vmatpush1.bf16.msra.mxu0 %v326
    %369 = vmatprep.subr.bf16.mxu0 0
    %370 = vmatpush1.bf16.msra.mxu0 %v327
    %371 = vmatprep.subr.bf16.mxu0 0
    %372 = vmatpush1.bf16.msra.mxu0 %v328
    %373 = vmatprep.subr.bf16.mxu0 0
    %374 = vmatpush1.bf16.msra.mxu0 %v329
    %375 = vmatprep.subr.bf16.mxu0 0
    %376 = vmatpush1.bf16.msra.mxu0 %v330
    %377 = vmatprep.subr.bf16.mxu0 0
    %378 = vmatpush1.bf16.msra.mxu0 %v331
    %379 = vmatprep.subr.bf16.mxu0 0
    %380 = vmatpush1.bf16.msra.mxu0 %v332
    %381 = vmatprep.mubr.bf16.mxu0 %v250
    %382 = vmatmul.mubr.bf16.gmra.mrb[0].mxu0 %v249
    %v383 = vpop.f32.mrb[0].mxu0
    %v384 = vadd.f32 %v241, %v383
    %v385 = vpop.f32.mrb[0].mxu0
    %v386 = vpop.f32.mrb[0].mxu0
    %v387 = vpop.f32.mrb[0].mxu0
    %388 = vdwg.mxu0
    %v389 = vld [vmem:[%s4] sm:$0x1]
    %v391 = vlaneseq
    %v392 = vshrl.u32 %v391, 7
    %v393 = vsub.s32 0, %v392
    %v394 = vrot.slane %v389, %v393
    %v396 = vadd.f32 %v384, %v394
    %v397 = vpack.c.bf16 %v396, %v396
    %398 = vst [vmem:[#allocation10] sm:$0xf] %v397
    // Predicated region
    $region38: #{tpu_custom_call.1} parent=1 // pred_check
      _
    $region39: #{tpu_custom_call.1} parent=1 // pred_check_branch
      %400 = sbr.rel (0) target = $region41
    $region40: #{tpu_custom_call.1} parent=1 // pred_region
      %s402 = ssub.s32 64, 64
      %403 = vsyncadd [#allocation4], %s402
      %s405 = sshll.u32 [#allocation10], 4
      %s406 = int_to_ptr.vmem [resolvable:$true] %s405
      %408 = dma.vmem_to_hbm [thread:$0]  %s406, 64, %s5, [#allocation4]
    $region41: #{tpu_custom_call.1} parent=1 // pred_fallthru
      _
    // Predicated region
    $region42: #{tpu_custom_call.1} parent=1 // pred_check
      _
    $region43: #{tpu_custom_call.1} parent=1 // pred_check_branch
      %410 = sbr.rel (0) target = $region45
    $region44: #{tpu_custom_call.1} parent=1 // pred_region
      %411 = dma.done [#allocation4], 64
    $region45: #{tpu_custom_call.1} parent=1 // pred_fallthru
      _
    %412 = vsyncpa [#allocation3], 1
    %413 = vsyncpa [#allocation6], 1
    %414 = vsyncpa [#allocation9], 1
    %415 = vsyncpa [#allocation4], 1

</llo_original>
